<compile_context>
chip_gen: v5e
topology: v5e:2x2
jax: 0.10.0
libtpu: 0.0.40
codegen_flags: <defaults>
</compile_context>

<pallas_src>
import functools

import jax
import jax.numpy as jnp
from jax import lax
from jax.experimental import pallas as pl
from jax.experimental.pallas import tpu as pltpu


# ----------------------------------------------------------------------------
# Generic K-tiled linear kernel:  out = x @ w + b
# Used for (a) the hoisted candidate-invariant layer-0 Q projection and
# (b) the final classifier, whose K = C*Tq*D is large at production size and
# therefore streams K-blocks instead of landing everything in VMEM at once.
# ----------------------------------------------------------------------------
def _linear_kernel(x_ref, w_ref, b_ref, out_ref, acc_ref):
    k = pl.program_id(0)

    @pl.when(k == 0)
    def _():
        acc_ref[...] = jnp.zeros_like(acc_ref)

    acc_ref[...] += jnp.dot(x_ref[...], w_ref[...],
                            preferred_element_type=jnp.float32)

    @pl.when(k == pl.num_programs(0) - 1)
    def _():
        out_ref[...] = (acc_ref[...] + b_ref[...]).astype(out_ref.dtype)


def linear_pallas(x, w, b):
    M, K = x.shape
    Fout = w.shape[1]
    block_k = K                                  # fallback: single K block
    for cand in (2048, 1024, 512, 256, 128):
        if K % cand == 0:
            block_k = cand
            break
    return pl.pallas_call(
        _linear_kernel,
        out_shape=jax.ShapeDtypeStruct((M, Fout), x.dtype),
        grid=(K // block_k,),
        in_specs=[pl.BlockSpec((M, block_k), lambda k: (0, k)),
                  pl.BlockSpec((block_k, Fout), lambda k: (k, 0)),
                  pl.BlockSpec((1, Fout), lambda k: (0, 0))],
        out_specs=pl.BlockSpec((M, Fout), lambda k: (0, 0)),
        scratch_shapes=[pltpu.VMEM((M, Fout), jnp.float32)],
        compiler_params=pltpu.CompilerParams(
            dimension_semantics=("arbitrary",)),
    )(x, w, b.reshape(1, Fout))


# ----------------------------------------------------------------------------
# Fused attention-stack kernel.  One grid step == one (candidate, batch) pair.
# Layer 0 = cross attention (pre-projected clip Q vs. the candidate K/V),
# layers 1..L-1 = self attention on the running activation (VMEM scratch).
# ----------------------------------------------------------------------------
def _fused_attn_stack_kernel(q0_ref, audio_ref,
                             wq_ref, wk_ref, wv_ref, wo_ref,
                             bq_ref, bk_ref, bv_ref, bo_ref,
                             out_ref, att_ref, ctx_ref,
                             *, num_heads, num_layers):
    Tq, D = att_ref.shape
    H = num_heads
    hd = D // H
    scale = 1.0 / float(hd) ** 0.5
    # A @ B^T expressed via dot_general (no materialized transpose of K).
    nt_dims = (((1,), (1,)), ((), ()))

    def attend(q_scaled, kv, l):
        # Full-K (K = D) projections — MXU contraction depth fully loaded.
        k = jnp.dot(kv, wk_ref[l], preferred_element_type=jnp.float32) + bk_ref[l]
        v = jnp.dot(kv, wv_ref[l], preferred_element_type=jnp.float32) + bv_ref[l]
        for h in range(H):                       # static unroll over heads
            sl = slice(h * hd, (h + 1) * hd)
            s = lax.dot_general(q_scaled[:, sl], k[:, sl], nt_dims,
                                preferred_element_type=jnp.float32)
            s = s - jnp.max(s, axis=-1, keepdims=True)    # stable softmax
            p = jnp.exp(s)
            p = p / jnp.sum(p, axis=-1, keepdims=True)    # exact normalization
            ctx_ref[:, sl] = jnp.dot(p, v[:, sl],
                                     preferred_element_type=jnp.float32)
        # ONE full-K output projection per layer (instead of H K=hd dots).
        return (jnp.dot(ctx_ref[...], wo_ref[l],
                        preferred_element_type=jnp.float32) + bo_ref[l])

    # Layer 0: cross attention.  q0 is the hoisted, pre-scaled clip projection.
    att_ref[...] = attend(q0_ref[0], audio_ref[0, 0], 0)

    # Layers 1..L-1: self attention, activation carried in the VMEM scratch.
    for l in range(1, num_layers):
        a = att_ref[...]
        q = (jnp.dot(a, wq_ref[l - 1], preferred_element_type=jnp.float32)
             + bq_ref[l - 1]) * scale
        att_ref[...] = attend(q, a, l)

    out_ref[...] = att_ref[...].reshape(1, 1, Tq, D).astype(out_ref.dtype)


def fused_attention_stack(q0, audio_candidates, kernel_params, num_heads):
    """q0: (B, Tq, D) pre-projected/scaled clip queries (layer 0 Q).
    audio_candidates: (B, C, Ta, D) in native layout (no HBM transpose).
    Returns (B, C, Tq, D) attention-stack outputs."""
    wq_h, wk, wv, wo, bq_h, bk, bv, bo = kernel_params
    B, Tq, D = q0.shape
    _, C, Ta, _ = audio_candidates.shape
    L = wk.shape[0]

    kernel = functools.partial(_fused_attn_stack_kernel,
                               num_heads=num_heads, num_layers=L)

    # Constant block index -> weights stay VMEM-resident across all grid steps.
    w_full = pl.BlockSpec((L, D, D), lambda c, b: (0, 0, 0))
    b_full = pl.BlockSpec((L, 1, D), lambda c, b: (0, 0, 0))
    w_hid = pl.BlockSpec((L - 1, D, D), lambda c, b: (0, 0, 0))
    b_hid = pl.BlockSpec((L - 1, 1, D), lambda c, b: (0, 0, 0))

    return pl.pallas_call(
        kernel,
        out_shape=jax.ShapeDtypeStruct((B, C, Tq, D), q0.dtype),
        grid=(C, B),
        in_specs=[
            pl.BlockSpec((1, Tq, D), lambda c, b: (b, 0, 0)),        # q0[b]
            pl.BlockSpec((1, 1, Ta, D), lambda c, b: (b, c, 0, 0)),  # audio[b,c]
            w_hid, w_full, w_full, w_full,                           # Wq(1:), Wk, Wv, Wo
            b_hid, b_full, b_full, b_full,                           # bq(1:), bk, bv, bo
        ],
        out_specs=pl.BlockSpec((1, 1, Tq, D), lambda c, b: (b, c, 0, 0)),
        scratch_shapes=[pltpu.VMEM((Tq, D), jnp.float32),   # layer activation
                        pltpu.VMEM((Tq, D), jnp.float32)],  # per-layer ctx (heads)
        compiler_params=pltpu.CompilerParams(
            dimension_semantics=("parallel", "parallel"),
            vmem_limit_bytes=48 * 1024 * 1024),
    )(q0, audio_candidates, wq_h, wk, wv, wo, bq_h, bk, bv, bo)


# ----------------------------------------------------------------------------
# AudioRetrievalHead forward (thin glue, layouts arranged so no HBM transposes)
# ----------------------------------------------------------------------------
def audio_retrieval_head_forward(clip, audio_candidates, params, num_heads):
    """clip: (B, Tq, D); audio_candidates: (B, C, Ta, D)."""
    (wq, wk, wv, wo, bq, bk, bv, bo), (w_out, b_out) = params
    B, Tq, D = clip.shape
    C = audio_candidates.shape[1]
    L = wq.shape[0]
    assert L >= 2, "module requires num_hidden > 1"
    hd = D // num_heads
    scale = 1.0 / float(hd) ** 0.5

    # Hoist the candidate-invariant layer-0 Q projection; fold in 1/sqrt(hd).
    q0 = linear_pallas(clip.reshape(B * Tq, D), wq[0] * scale, bq[0] * scale)
    q0 = q0.reshape(B, Tq, D)

    kernel_params = (wq[1:], wk, wv, wo, bq[1:], bk, bv, bo)
    att = fused_attention_stack(q0, audio_candidates, kernel_params, num_heads)

    # (B, C, Tq, D) native layout -> candidate-major flatten is a free view and
    # matches torch.cat([flatten(att_c) for c], dim=1).
    fc_cat = att.reshape(B, C * Tq * D)
    return linear_pallas(fc_cat, w_out, b_out)


# ----------------------------------------------------------------------------
# Pure-JAX reference (correctness check)
# ----------------------------------------------------------------------------
def _ref_mha(q_x, k_x, v_x, params, num_heads):
    wq, wk, wv, bq, bk, bv, wo, bo = params
    q = q_x @ wq + bq
    k = k_x @ wk + bk
    v = v_x @ wv + bv
    B, Tq, D = q.shape
    hd = D // num_heads
    qh = q.reshape(B, Tq, num_heads, hd).transpose(0, 2, 1, 3)
    kh = k.reshape(B, -1, num_heads, hd).transpose(0, 2, 1, 3)
    vh = v.reshape(B, -1, num_heads, hd).transpose(0, 2, 1, 3)
    s = jnp.einsum("bhqd,bhkd->bhqk", qh, kh) / jnp.sqrt(float(hd))
    p = jax.nn.softmax(s, axis=-1)
    o = jnp.einsum("bhqk,bhkd->bhqd", p, vh)
    o = o.transpose(0, 2, 1, 3).reshape(B, Tq, D)
    return o @ wo + bo


def _ref_forward(clip, audio_candidates, params, num_heads):
    (wq, wk, wv, wo, bq, bk, bv, bo), (w_out, b_out) = params
    L = wq.shape[0]
    audio_candidates = jnp.transpose(audio_candidates, (1, 0, 2, 3))
    fc_outs = []
    for c in range(audio_candidates.shape[0]):
        a = audio_candidates[c]
        p0 = (wq[0], wk[0], wv[0], bq[0], bk[0], bv[0], wo[0], bo[0])
        att = _ref_mha(clip, a, a, p0, num_heads)
        for l in range(1, L):
            pl_ = (wq[l], wk[l], wv[l], bq[l], bk[l], bv[l], wo[l], bo[l])
            att = _ref_mha(att, att, att, pl_, num_heads)
        fc_outs.append(att.reshape(att.shape[0], -1))
    fc_cat = jnp.concatenate(fc_outs, axis=1)
    return fc_cat @ w_out + b_out


# ----------------------------------------------------------------------------
# Deterministic parameter init (stacked: layer 0 = cross-attn, 1.. = self-attn)
# ----------------------------------------------------------------------------
def init_stacked_attn_params(key, dim, num_layers, scale=0.05):
    ks = jax.random.split(key, 8)
    wq = jax.random.normal(ks[0], (num_layers, dim, dim), jnp.float32) * scale
    wk = jax.random.normal(ks[1], (num_layers, dim, dim), jnp.float32) * scale
    wv = jax.random.normal(ks[2], (num_layers, dim, dim), jnp.float32) * scale
    wo = jax.random.normal(ks[3], (num_layers, dim, dim), jnp.float32) * scale
    bq = jax.random.normal(ks[4], (num_layers, 1, dim), jnp.float32) * scale
    bk = jax.random.normal(ks[5], (num_layers, 1, dim), jnp.float32) * scale
    bv = jax.random.normal(ks[6], (num_layers, 1, dim), jnp.float32) * scale
    bo = jax.random.normal(ks[7], (num_layers, 1, dim), jnp.float32) * scale
    return (wq, wk, wv, wo, bq, bk, bv, bo)


if __name__ == "__main__":
    # Small shapes consistent with the module (scaled down from 768/8/5/32):
    B = 2           # batch
    C = 3           # num_candidates
    D = 128         # attention_dim
    H = 4           # attention_heads
    Tq = 8          # video query tokens (32 in the original module)
    Ta = 8          # audio query tokens
    NUM_HIDDEN = 2  # self-attention layers
    L = 1 + NUM_HIDDEN

    root = jax.random.PRNGKey(0)
    k_clip, k_audio, k_attn, k_wout, k_bout = jax.random.split(root, 5)

    clip = jax.random.normal(k_clip, (B, Tq, D), jnp.float32)
    audio_candidates = jax.random.normal(k_audio, (B, C, Ta, D), jnp.float32)

    stacked_attn = init_stacked_attn_params(k_attn, D, L)
    in_dim = D * Tq * C   # attention_dim * video_query_tokens * num_candidates
    w_out = jax.random.normal(k_wout, (in_dim, C), jnp.float32) * 0.02
    b_out = jax.random.normal(k_bout, (C,), jnp.float32) * 0.02
    params = (stacked_attn, (w_out, b_out))

    out = audio_retrieval_head_forward(clip, audio_candidates, params, H)
    out = jax.block_until_ready(out)
    assert out.shape == (B, C), out.shape

    ref = _ref_forward(clip, audio_candidates, params, H)
    assert jnp.allclose(out, ref, atol=1e-3, rtol=1e-3), (out, ref)

    print("KERNEL_OK")
</pallas_src>

<mosaic_0001>
module attributes {stable_mosaic.version = 11 : i64} {
  func.func @_linear_kernel(%arg0: i32, %arg1: memref<16x128xf32, #tpu.memory_space<vmem>>, %arg2: memref<128x128xf32, #tpu.memory_space<vmem>>, %arg3: memref<1x128xf32, #tpu.memory_space<vmem>>, %arg4: memref<16x128xf32, #tpu.memory_space<vmem>>, %arg5: memref<16x128xf32, #tpu.memory_space<vmem>>) attributes {dimension_semantics = [#tpu.dimension_semantics<arbitrary>], iteration_bounds = array<i64: 1>, scalar_prefetch = 0 : i64, scratch_operands = 1 : i64, tpu.core_type = #tpu.core_type<tc>, window_params = [{transform_indices = @transform_0, window_bounds = array<i64: 16, 128>}, {transform_indices = @transform_1, window_bounds = array<i64: 128, 128>}, {pipeline_mode = #tpu.pipeline_mode<synchronous>, transform_indices = @transform_2, window_bounds = array<i64: 1, 128>}, {pipeline_mode = #tpu.pipeline_mode<synchronous>, transform_indices = @transform_3, window_bounds = array<i64: 16, 128>}]} {
    %c0_i32 = arith.constant 0 : i32
    %0 = arith.cmpi eq, %arg0, %c0_i32 : i32
    %1 = arith.extui %0 : i1 to i32
    %c0_i32_0 = arith.constant 0 : i32
    %2 = arith.cmpi ne, %1, %c0_i32_0 : i32
    scf.if %2 {
      %cst_10 = arith.constant 0.000000e+00 : f32
      %12 = vector.broadcast %cst_10 : f32 to vector<16x128xf32>
      %c0_11 = arith.constant 0 : index
      %c0_12 = arith.constant 0 : index
      %13 = vector.load %arg5[%c0_11, %c0_12] : memref<16x128xf32, #tpu.memory_space<vmem>>, vector<16x128xf32>
      tpu.vector_store %arg5[%c0_11, %c0_12], %12 {strides = array<i32>} : memref<16x128xf32, #tpu.memory_space<vmem>>, vector<16x128xf32>,
    } else {
    }
    %c0 = arith.constant 0 : index
    %c0_1 = arith.constant 0 : index
    %3 = vector.load %arg5[%c0, %c0_1] : memref<16x128xf32, #tpu.memory_space<vmem>>, vector<16x128xf32>
    %c0_2 = arith.constant 0 : index
    %c0_3 = arith.constant 0 : index
    %4 = vector.load %arg1[%c0_2, %c0_3] : memref<16x128xf32, #tpu.memory_space<vmem>>, vector<16x128xf32>
    %c0_4 = arith.constant 0 : index
    %c0_5 = arith.constant 0 : index
    %5 = vector.load %arg2[%c0_4, %c0_5] : memref<128x128xf32, #tpu.memory_space<vmem>>, vector<128x128xf32>
    %cst = arith.constant dense<0.000000e+00> : vector<16x128xf32>
    %6 = tpu.matmul %4, %5, %cst {dimension_numbers = #tpu.dot_dimension_numbers<[1], [0], [0], [1], [0, 0, 1, 1], [], []>} : vector<16x128xf32>, vector<128x128xf32>, vector<16x128xf32> -> vector<16x128xf32>
    %7 = arith.addf %3, %6 : vector<16x128xf32>
    %c0_6 = arith.constant 0 : index
    %c0_7 = arith.constant 0 : index
    %8 = vector.load %arg5[%c0_6, %c0_7] : memref<16x128xf32, #tpu.memory_space<vmem>>, vector<16x128xf32>
    tpu.vector_store %arg5[%c0_6, %c0_7], %7 {strides = array<i32>} : memref<16x128xf32, #tpu.memory_space<vmem>>, vector<16x128xf32>,
    %c0_i32_8 = arith.constant 0 : i32
    %9 = arith.cmpi eq, %arg0, %c0_i32_8 : i32
    %10 = arith.extui %9 : i1 to i32
    %c0_i32_9 = arith.constant 0 : i32
    %11 = arith.cmpi ne, %10, %c0_i32_9 : i32
    scf.if %11 {
      %c0_10 = arith.constant 0 : index
      %c0_11 = arith.constant 0 : index
      %12 = vector.load %arg5[%c0_10, %c0_11] : memref<16x128xf32, #tpu.memory_space<vmem>>, vector<16x128xf32>
      %c0_12 = arith.constant 0 : index
      %c0_13 = arith.constant 0 : index
      %13 = vector.load %arg3[%c0_12, %c0_13] : memref<1x128xf32, #tpu.memory_space<vmem>>, vector<1x128xf32>
      %14 = vector.broadcast %13 : vector<1x128xf32> to vector<16x128xf32>
      %15 = arith.addf %12, %14 : vector<16x128xf32>
      %c0_14 = arith.constant 0 : index
      %c0_15 = arith.constant 0 : index
      %16 = vector.load %arg4[%c0_14, %c0_15] : memref<16x128xf32, #tpu.memory_space<vmem>>, vector<16x128xf32>
      tpu.vector_store %arg4[%c0_14, %c0_15], %15 {strides = array<i32>} : memref<16x128xf32, #tpu.memory_space<vmem>>, vector<16x128xf32>,
    } else {
    }
    return
  }
  func.func @transform_0(%arg0: i32) -> (i32, i32) {
    %c0_i32 = arith.constant 0 : i32
    %c0_i32_0 = arith.constant 0 : i32
    return %c0_i32, %arg0 : i32, i32
  }
  func.func @transform_1(%arg0: i32) -> (i32, i32) {
    %c0_i32 = arith.constant 0 : i32
    %c0_i32_0 = arith.constant 0 : i32
    return %arg0, %c0_i32 : i32, i32
  }
  func.func @transform_2(%arg0: i32) -> (i32, i32) {
    %c0_i32 = arith.constant 0 : i32
    %c0_i32_0 = arith.constant 0 : i32
    %c0_i32_1 = arith.constant 0 : i32
    return %c0_i32, %c0_i32_0 : i32, i32
  }
  func.func @transform_3(%arg0: i32) -> (i32, i32) {
    %c0_i32 = arith.constant 0 : i32
    %c0_i32_0 = arith.constant 0 : i32
    %c0_i32_1 = arith.constant 0 : i32
    return %c0_i32, %c0_i32_0 : i32, i32
  }
}

</mosaic_0001>

<llo_original>
// kernel: tpu_custom_call.1
$region0: #{tpu_custom_call.1}
  #allocation0 [shape = 'u32[]', space=smem, size = 0x4, offset = 0x4, fixed_abs, tag = 'smem constant byte address 0x4 - core index']
  #allocation1 [shape = 'u32[72,128]{1,0:T(1,128)}', space=vmem, size = 0x9000, scoped, tag = 'internal scratch']
  #allocation2 [shape = 'f32[16,128]{1,0:T(8,128)}', space=vmem, size = 0x2000, scoped, tag = 'scratch operand']
  %s0 = inlined_call_operand.hbm [shape: f32[16,128], index: 0, kind: input, shape index: {}]
  %s1 = inlined_call_operand.hbm [shape: f32[128,128], index: 1, kind: input, shape index: {}]
  %s2 = inlined_call_operand.vmem [shape: f32[1,128], index: 2, kind: input, shape index: {}]
  %s3 = inlined_call_operand.hbm [shape: f32[16,128], index: 3, kind: output, shape index: {}]
  %s4 = sld [smem:[#allocation0]]
  $region38: #{tpu_custom_call.1} parent=0
    _
  %s6 = ssub.s32 1, %s4
  %s7 = scalar_select 0, %s6, %s4
  $region1: #{tpu_custom_call.1} parent=0
    #allocation3 [shape = 'u8[8192]{0}', space=vmem, size = 0x2000, scoped, tag = 'input window, operand 0, single buffered']
    #allocation4 [shape = 's32[1]{0}', space=sflag, size = 0x4, scoped, tag = 'scoped memory for tpu_custom_call.1']
    #allocation5 [shape = 's32[1]{0}', space=sflag, size = 0x4, scoped, tag = 'scoped memory for tpu_custom_call.1']
    #allocation6 [shape = 'u8[65536]{0}', space=vmem, size = 0x10000, scoped, tag = 'input window, operand 1, single buffered']
    #allocation7 [shape = 's32[1]{0}', space=sflag, size = 0x4, scoped, tag = 'scoped memory for tpu_custom_call.1']
    #allocation8 [shape = 'u8[8192]{0}', space=vmem, size = 0x2000, scoped, tag = 'output window, operand 0, single buffered']
    %8 = vsyncpa [#allocation4], 0
    %9 = vsyncpa [#allocation7], 0
    %10 = vsyncpa [#allocation5], 0
    // Predicated region
    $region2: #{tpu_custom_call.1} parent=1 // pred_check
      _
    $region3: #{tpu_custom_call.1} parent=1 // pred_check_branch
      %12 = sbr.rel (0) target = $region5
    $region4: #{tpu_custom_call.1} parent=1 // pred_region
      %14 = vsyncadd [#allocation4], 0
      %s15 = sshll.u32 %s0, 4
      %s16 = int_to_ptr.hbm [resolvable:$true] %s15
      %s17 = sshll.u32 [#allocation3], 4
      %s18 = int_to_ptr.vmem [resolvable:$true] %s17
      %23 = dma.hbm_to_vmem [thread:$0]  %s16, 256, %s18, [#allocation4], 128, 128, 8
    $region5: #{tpu_custom_call.1} parent=1 // pred_fallthru
      _
    // Predicated region
    $region6: #{tpu_custom_call.1} parent=1 // pred_check
      _
    $region7: #{tpu_custom_call.1} parent=1 // pred_check_branch
      %25 = sbr.rel (0) target = $region9
    $region8: #{tpu_custom_call.1} parent=1 // pred_region
      %27 = vsyncadd [#allocation7], 0
      %s28 = sshll.u32 %s1, 4
      %s29 = int_to_ptr.hbm [resolvable:$true] %s28
      %s30 = sshll.u32 [#allocation6], 4
      %s31 = int_to_ptr.vmem [resolvable:$true] %s30
      %36 = dma.hbm_to_vmem [thread:$0]  %s29, 2048, %s31, [#allocation7], 128, 128, 8
    $region9: #{tpu_custom_call.1} parent=1 // pred_fallthru
      _
    // Predicated region
    $region10: #{tpu_custom_call.1} parent=1 // pred_check
      _
    $region11: #{tpu_custom_call.1} parent=1 // pred_check_branch
      %38 = sbr.rel (0) target = $region13
    $region12: #{tpu_custom_call.1} parent=1 // pred_region
      _
    $region13: #{tpu_custom_call.1} parent=1 // pred_fallthru
      _
    // Predicated region
    $region14: #{tpu_custom_call.1} parent=1 // pred_check
      _
    $region15: #{tpu_custom_call.1} parent=1 // pred_check_branch
      %40 = sbr.rel (0) target = $region17
    $region16: #{tpu_custom_call.1} parent=1 // pred_region
      %42 = dma.done [#allocation4], 256
    $region17: #{tpu_custom_call.1} parent=1 // pred_fallthru
      _
    // Predicated region
    $region18: #{tpu_custom_call.1} parent=1 // pred_check
      _
    $region19: #{tpu_custom_call.1} parent=1 // pred_check_branch
      %44 = sbr.rel (0) target = $region21
    $region20: #{tpu_custom_call.1} parent=1 // pred_region
      %46 = dma.done [#allocation7], 2048
    $region21: #{tpu_custom_call.1} parent=1 // pred_fallthru
      _
    %p47 = scmp.eq.s32.totalorder 0, 0
    // Predicated region
    $region22: #{tpu_custom_call.1} parent=1 // pred_check
      %p48 = pneg %p47
    $region23: #{tpu_custom_call.1} parent=1 // pred_check_branch
      %50 = sbr.rel (%p48) target = $region25
    $region24: #{tpu_custom_call.1} parent=1 // pred_region
      %51 = vst [vmem:[#allocation2] sm:$0xff] 0.0
      %52 = vst [vmem:[#allocation2 + $0x8] sm:$0xff] 0.0
    $region25: #{tpu_custom_call.1} parent=1 // pred_fallthru
      _
    %v53 = vld [vmem:[#allocation2] sm:$0xff]
    %v54 = vld [vmem:[#allocation2 + $0x8] sm:$0xff]
    %v55 = vld [vmem:[#allocation3] sm:$0xff]
    %v56 = vld [vmem:[#allocation3 + $0x8] sm:$0xff]
    %v57 = vld [vmem:[#allocation6] sm:$0xff]
    %v58 = vld [vmem:[#allocation6 + $0x8] sm:$0xff]
    %v59 = vld [vmem:[#allocation6 + $0x10] sm:$0xff]
    %v60 = vld [vmem:[#allocation6 + $0x18] sm:$0xff]
    %v61 = vld [vmem:[#allocation6 + $0x20] sm:$0xff]
    %v62 = vld [vmem:[#allocation6 + $0x28] sm:$0xff]
    %v63 = vld [vmem:[#allocation6 + $0x30] sm:$0xff]
    %v64 = vld [vmem:[#allocation6 + $0x38] sm:$0xff]
    %v65 = vld [vmem:[#allocation6 + $0x40] sm:$0xff]
    %v66 = vld [vmem:[#allocation6 + $0x48] sm:$0xff]
    %v67 = vld [vmem:[#allocation6 + $0x50] sm:$0xff]
    %v68 = vld [vmem:[#allocation6 + $0x58] sm:$0xff]
    %v69 = vld [vmem:[#allocation6 + $0x60] sm:$0xff]
    %v70 = vld [vmem:[#allocation6 + $0x68] sm:$0xff]
    %v71 = vld [vmem:[#allocation6 + $0x70] sm:$0xff]
    %v72 = vld [vmem:[#allocation6 + $0x78] sm:$0xff]
    %73 = vmatpush.msra.mxu0 %v72
    %74 = vmatpush.msra.mxu0 %v71
    %75 = vmatpush.msra.mxu0 %v70
    %76 = vmatpush.msra.mxu0 %v69
    %77 = vmatpush.msra.mxu0 %v68
    %78 = vmatpush.msra.mxu0 %v67
    %79 = vmatpush.msra.mxu0 %v66
    %80 = vmatpush.msra.mxu0 %v65
    %81 = vmatpush.msra.mxu0 %v64
    %82 = vmatpush.msra.mxu0 %v63
    %83 = vmatpush.msra.mxu0 %v62
    %84 = vmatpush.msra.mxu0 %v61
    %85 = vmatpush.msra.mxu0 %v60
    %86 = vmatpush.msra.mxu0 %v59
    %87 = vmatpush.msra.mxu0 %v58
    %88 = vmatpush.msra.mxu0 %v57
    %89 = vmatmul.f32.gmra.mxu0 %v55
    %v90 = vpop.f32.mrf.mxu0
    %v91 = vadd.f32 0.0, %v90
    %92 = vmatmul.f32.gmra.mxu0 %v56
    %v93 = vpop.f32.mrf.mxu0
    %v94 = vadd.f32 0.0, %v93
    %95 = vdwg.mxu0
    %v96 = vadd.f32 %v53, %v91
    %v97 = vadd.f32 %v54, %v94
    %98 = vst [vmem:[#allocation2] sm:$0xff] %v96
    %99 = vst [vmem:[#allocation2 + $0x8] sm:$0xff] %v97
    // Predicated region
    $region26: #{tpu_custom_call.1} parent=1 // pred_check
      %p100 = pneg %p47
    $region27: #{tpu_custom_call.1} parent=1 // pred_check_branch
      %102 = sbr.rel (%p100) target = $region29
    $region28: #{tpu_custom_call.1} parent=1 // pred_region
      %v103 = vld [vmem:[#allocation2] sm:$0xff]
      %v104 = vld [vmem:[#allocation2 + $0x8] sm:$0xff]
      %v105 = vld [vmem:[%s2] sm:$0x1]
      %v107 = vperm.slane %v105, 0
      %v109 = vadd.f32 %v103, %v107
      %v110 = vadd.f32 %v104, %v107
      %111 = vst [vmem:[#allocation8] sm:$0xff] %v109
      %112 = vst [vmem:[#allocation8 + $0x8] sm:$0xff] %v110
    $region29: #{tpu_custom_call.1} parent=1 // pred_fallthru
      _
    // Predicated region
    $region30: #{tpu_custom_call.1} parent=1 // pred_check
      _
    $region31: #{tpu_custom_call.1} parent=1 // pred_check_branch
      %114 = sbr.rel (0) target = $region33
    $region32: #{tpu_custom_call.1} parent=1 // pred_region
      %116 = vsyncadd [#allocation5], 0
      %s117 = sshll.u32 [#allocation8], 4
      %s118 = int_to_ptr.vmem [resolvable:$true] %s117
      %s119 = sshll.u32 %s3, 4
      %s120 = int_to_ptr.hbm [resolvable:$true] %s119
      %125 = dma.vmem_to_hbm [thread:$0]  %s118, 256, %s120, [#allocation5], 128, 128, 8
    $region33: #{tpu_custom_call.1} parent=1 // pred_fallthru
      _
    // Predicated region
    $region34: #{tpu_custom_call.1} parent=1 // pred_check
      _
    $region35: #{tpu_custom_call.1} parent=1 // pred_check_branch
      %127 = sbr.rel (0) target = $region37
    $region36: #{tpu_custom_call.1} parent=1 // pred_region
      %129 = dma.done [#allocation5], 256
    $region37: #{tpu_custom_call.1} parent=1 // pred_fallthru
      _
    %130 = vsyncpa [#allocation4], 1
    %131 = vsyncpa [#allocation7], 1
    %132 = vsyncpa [#allocation5], 1

</llo_original>
